<compile_context>
chip_gen: v7x
topology: tpu7x:2x2x1
jax: 0.10.0
libtpu: 0.0.40
codegen_flags: <defaults>
</compile_context>

<pallas_src>
import jax
import jax.numpy as jnp
import numpy as np
from jax.experimental import pallas as pl
from jax.experimental.pallas import tpu as pltpu


LANE = 128
HIDDEN_PAD = 128                     # padded width of the 32-wide hidden activations
_HIGHEST = jax.lax.Precision.HIGHEST


def _round_up(n, m):
    return ((n + m - 1) // m) * m


# ----------------------------------------------------------------------------
# Kernel: one batch tile, fused 3-matmul chain.
# ----------------------------------------------------------------------------
def autoencoder_kernel(x_ref,
                       w1_ref, b1_ref,
                       w23_ref, b23_ref,
                       w4_ref, b4_ref,
                       o_ref):
    """x:(tb, D) -> ReLU(x@w1+b1) -> ReLU(h1@w23+b23) -> h2@w4+b4 -> (tb, D).

    H = 128 is the zero-padded hidden width; w23 = w2 @ w3 folds the two
    bottleneck Linears (no nonlinearity between them in the module).  Padded
    lanes stay identically zero (zero weight cols/rows, zero bias, ReLU(0)=0).
    All accumulation is f32 on the MXU, matching fp32 nn.Linear.
    """
    x = x_ref[...]

    h1 = jnp.dot(x, w1_ref[...], preferred_element_type=jnp.float32) + b1_ref[...]
    h1 = jnp.maximum(h1, 0.0)                      # ReLU

    h2 = jnp.dot(h1, w23_ref[...], preferred_element_type=jnp.float32) + b23_ref[...]
    h2 = jnp.maximum(h2, 0.0)                      # ReLU

    y = jnp.dot(h2, w4_ref[...], preferred_element_type=jnp.float32) + b4_ref[...]
    o_ref[...] = y.astype(o_ref.dtype)


# ----------------------------------------------------------------------------
# Parameter preparation: fuse bottleneck, zero-pad hidden dims only.
# ----------------------------------------------------------------------------
def _prepare_params(params, H=HIDDEN_PAD):
    w1, b1 = params["w1"], params["b1"]            # (D, 32), (1, 32)
    w2, b2 = params["w2"], params["b2"]            # (32, 16), (1, 16)
    w3, b3 = params["w3"], params["b3"]            # (16, 32), (1, 32)
    w4, b4 = params["w4"], params["b4"]            # (32, D), (1, D)

    # Algebraic fusion of the two bottleneck Linears (exact up to rounding).
    w23 = jnp.dot(w2, w3, precision=_HIGHEST)              # (32, 32)
    b23 = jnp.dot(b2, w3, precision=_HIGHEST) + b3         # (1, 32)

    pad_cols = lambda a, c: jnp.pad(a, ((0, 0), (0, c - a.shape[1])))
    pad_rows = lambda a, r: jnp.pad(a, ((0, r - a.shape[0]), (0, 0)))

    w1p = pad_cols(w1, H)                       # (D, H)
    b1p = pad_cols(b1, H)                       # (1, H)
    w23p = pad_rows(pad_cols(w23, H), H)        # (H, H)
    b23p = pad_cols(b23, H)                     # (1, H)
    w4p = pad_rows(w4, H)                       # (H, D)  -- output dim unpadded
    b4p = b4                                    # (1, D)
    return w1p, b1p, w23p, b23p, w4p, b4p


# ----------------------------------------------------------------------------
# VMEM budgeting / batch-tile choice.
# ----------------------------------------------------------------------------
def _vmem_budget_bytes():
    """~75% of the chip's VMEM (v5e/v6e: 128 MiB -> 96 MiB, v7x: 64 MiB ->
    48 MiB), with a conservative v7x-sized fallback if the query fails."""
    cap = 64 * 1024 * 1024
    try:
        cap = int(pltpu.get_tpu_info().vmem_capacity_bytes)
    except Exception:
        pass
    return (3 * cap) // 4


def _resident_weight_bytes(D, H=HIDDEN_PAD, buffers=2):
    """f32 bytes held in VMEM by the (double-buffered) resident weights/biases."""
    elems = D * H + H * H + H * D + 2 * H + D      # w1, w23, w4, b1, b23, b4
    return buffers * 4 * elems


def _choose_batch_tile(B, D, vmem_budget):
    """Biggest batch tile that keeps 2x double-buffered x tiles + 2x y tiles
    plus the resident weights inside the VMEM budget (capped at 8192 rows);
    for small batches keep >= 2 grid steps; prefer an EVEN step count so the
    'parallel' batch axis splits evenly across v7x's two TensorCores."""
    stream_budget = max(vmem_budget - _resident_weight_bytes(D), 2 * 1024 * 1024)
    row_bytes = 4 * D * 4                          # (2 in + 2 out buffers) * f32
    cap = max(8, (stream_budget // row_bytes) // 8 * 8)
    tb = min(8192, cap)

    if B <= tb:
        if B >= 16:
            tb = _round_up(pl.cdiv(B, 2), 8)       # 2 grid steps
        else:
            tb = _round_up(B, 8)                   # tiny batch: single step
    else:
        steps = pl.cdiv(B, tb)
        if steps > 1 and steps % 2 == 1:
            tb = _round_up(pl.cdiv(B, steps + 1), 8)
    return tb


# ----------------------------------------------------------------------------
# Wrapper.
# ----------------------------------------------------------------------------
def autoencoder_forward(x, params, *, tb=None):
    """x: [B, D] float32. params: dict of (in,out)-layout weights (PyTorch W.T)
    and (1,out) biases. Returns [B, D] float32."""
    B, D = x.shape
    vmem_budget = _vmem_budget_bytes()
    if tb is None:
        tb = _choose_batch_tile(B, D, vmem_budget)
    else:
        assert tb % 8 == 0, "batch tile must be a multiple of 8"

    w1, b1, w23, b23, w4, b4 = _prepare_params(params)

    # Resident (constant index_map) weights/biases: DMA'd once, reused every
    # grid step.  (Optionally single-bufferable via pipeline_mode=pl.Buffered(1)
    # to halve their VMEM footprint on v7x at very large input_dim.)
    # TODO(synk): for input_dim large enough that w1/w4 are >= ~8 MiB each,
    # tile the feature axis over an extra "arbitrary" grid axis instead of
    # keeping full-width weights resident (needed to fit v7x's 64 MiB VMEM).
    resident = lambda a: pl.BlockSpec(a.shape, lambda i: (0, 0))

    grid = (pl.cdiv(B, tb),)   # ragged last batch tile is masked by Pallas:
                               # no wrapper-side batch pad / output slice.

    out = pl.pallas_call(
        autoencoder_kernel,
        out_shape=jax.ShapeDtypeStruct((B, D), x.dtype),
        grid_spec=pltpu.PrefetchScalarGridSpec(
            num_scalar_prefetch=0,
            grid=grid,
            in_specs=[
                pl.BlockSpec((tb, D), lambda i: (i, 0)),   # streamed x tile (unpadded D)
                resident(w1), resident(b1),
                resident(w23), resident(b23),
                resident(w4), resident(b4),
            ],
            out_specs=pl.BlockSpec((tb, D), lambda i: (i, 0)),
        ),
        compiler_params=pltpu.CompilerParams(
            dimension_semantics=("parallel",),
            vmem_limit_bytes=int(vmem_budget),
        ),
    )(x, w1, b1, w23, b23, w4, b4)

    return out


# ----------------------------------------------------------------------------
# Parameters / reference (pure JAX, unfused, fp32) for validation.
# ----------------------------------------------------------------------------
def init_params(key, input_dim):
    """Deterministic synthetic parameters. Weights stored as [in, out]
    (i.e. PyTorch's W.T), so y = x @ W + b matches nn.Linear."""
    def linear(k, fan_in, fan_out):
        kw, kb = jax.random.split(k)
        bound = 1.0 / np.sqrt(fan_in)
        w = jax.random.uniform(kw, (fan_in, fan_out), jnp.float32, -bound, bound)
        b = jax.random.uniform(kb, (1, fan_out), jnp.float32, -bound, bound)
        return w, b

    k1, k2, k3, k4 = jax.random.split(key, 4)
    w1, b1 = linear(k1, input_dim, 32)
    w2, b2 = linear(k2, 32, 16)
    w3, b3 = linear(k3, 16, 32)
    w4, b4 = linear(k4, 32, input_dim)
    return {"w1": w1, "b1": b1, "w2": w2, "b2": b2,
            "w3": w3, "b3": b3, "w4": w4, "b4": b4}


def reference_forward(x, p):
    h = jnp.maximum(jnp.dot(x, p["w1"], precision=_HIGHEST) + p["b1"], 0.0)
    z = jnp.dot(h, p["w2"], precision=_HIGHEST) + p["b2"]
    h = jnp.maximum(jnp.dot(z, p["w3"], precision=_HIGHEST) + p["b3"], 0.0)
    return jnp.dot(h, p["w4"], precision=_HIGHEST) + p["b4"]


if __name__ == "__main__":
    key = jax.random.PRNGKey(0)
    kp, kx = jax.random.split(key)

    input_dim = 64
    batch = 16

    params = init_params(kp, input_dim)
    x = jax.random.normal(kx, (batch, input_dim), jnp.float32)

    out = autoencoder_forward(x, params)
    out = jax.block_until_ready(out)

    ref = reference_forward(x, params)
    np.testing.assert_allclose(np.asarray(out), np.asarray(ref), rtol=1e-5, atol=1e-5)

    print("KERNEL_OK")
</pallas_src>

<mosaic_0001>
module attributes {stable_mosaic.version = 11 : i64} {
  func.func @autoencoder_kernel(%arg0: i32, %arg1: memref<8x64xf32, #tpu.memory_space<vmem>>, %arg2: memref<64x128xf32, #tpu.memory_space<vmem>>, %arg3: memref<1x128xf32, #tpu.memory_space<vmem>>, %arg4: memref<128x128xf32, #tpu.memory_space<vmem>>, %arg5: memref<1x128xf32, #tpu.memory_space<vmem>>, %arg6: memref<128x64xf32, #tpu.memory_space<vmem>>, %arg7: memref<1x64xf32, #tpu.memory_space<vmem>>, %arg8: memref<8x64xf32, #tpu.memory_space<vmem>>) attributes {dimension_semantics = [#tpu.dimension_semantics<parallel>], iteration_bounds = array<i64: 2>, scalar_prefetch = 0 : i64, scratch_operands = 0 : i64, tpu.core_type = #tpu.core_type<tc>, window_params = [{transform_indices = @transform_0, window_bounds = array<i64: 8, 64>}, {pipeline_mode = #tpu.pipeline_mode<synchronous>, transform_indices = @transform_1, window_bounds = array<i64: 64, 128>}, {pipeline_mode = #tpu.pipeline_mode<synchronous>, transform_indices = @transform_2, window_bounds = array<i64: 1, 128>}, {pipeline_mode = #tpu.pipeline_mode<synchronous>, transform_indices = @transform_3, window_bounds = array<i64: 128, 128>}, {pipeline_mode = #tpu.pipeline_mode<synchronous>, transform_indices = @transform_4, window_bounds = array<i64: 1, 128>}, {pipeline_mode = #tpu.pipeline_mode<synchronous>, transform_indices = @transform_5, window_bounds = array<i64: 128, 64>}, {pipeline_mode = #tpu.pipeline_mode<synchronous>, transform_indices = @transform_6, window_bounds = array<i64: 1, 64>}, {transform_indices = @transform_7, window_bounds = array<i64: 8, 64>}]} {
    %c0 = arith.constant 0 : index
    %c0_0 = arith.constant 0 : index
    %0 = vector.load %arg1[%c0, %c0_0] : memref<8x64xf32, #tpu.memory_space<vmem>>, vector<8x64xf32>
    %c0_1 = arith.constant 0 : index
    %c0_2 = arith.constant 0 : index
    %1 = vector.load %arg2[%c0_1, %c0_2] : memref<64x128xf32, #tpu.memory_space<vmem>>, vector<64x128xf32>
    %cst = arith.constant dense<0.000000e+00> : vector<8x128xf32>
    %2 = tpu.matmul %0, %1, %cst {dimension_numbers = #tpu.dot_dimension_numbers<[1], [0], [0], [1], [0, 0, 1, 1], [], []>} : vector<8x64xf32>, vector<64x128xf32>, vector<8x128xf32> -> vector<8x128xf32>
    %c0_3 = arith.constant 0 : index
    %c0_4 = arith.constant 0 : index
    %3 = vector.load %arg3[%c0_3, %c0_4] : memref<1x128xf32, #tpu.memory_space<vmem>>, vector<1x128xf32>
    %4 = vector.broadcast %3 : vector<1x128xf32> to vector<8x128xf32>
    %5 = arith.addf %2, %4 : vector<8x128xf32>
    %cst_5 = arith.constant 0.000000e+00 : f32
    %6 = vector.broadcast %cst_5 : f32 to vector<8x128xf32>
    %7 = arith.maximumf %5, %6 : vector<8x128xf32>
    %c0_6 = arith.constant 0 : index
    %c0_7 = arith.constant 0 : index
    %8 = vector.load %arg4[%c0_6, %c0_7] : memref<128x128xf32, #tpu.memory_space<vmem>>, vector<128x128xf32>
    %cst_8 = arith.constant dense<0.000000e+00> : vector<8x128xf32>
    %9 = tpu.matmul %7, %8, %cst_8 {dimension_numbers = #tpu.dot_dimension_numbers<[1], [0], [0], [1], [0, 0, 1, 1], [], []>} : vector<8x128xf32>, vector<128x128xf32>, vector<8x128xf32> -> vector<8x128xf32>
    %c0_9 = arith.constant 0 : index
    %c0_10 = arith.constant 0 : index
    %10 = vector.load %arg5[%c0_9, %c0_10] : memref<1x128xf32, #tpu.memory_space<vmem>>, vector<1x128xf32>
    %11 = vector.broadcast %10 : vector<1x128xf32> to vector<8x128xf32>
    %12 = arith.addf %9, %11 : vector<8x128xf32>
    %cst_11 = arith.constant 0.000000e+00 : f32
    %13 = vector.broadcast %cst_11 : f32 to vector<8x128xf32>
    %14 = arith.maximumf %12, %13 : vector<8x128xf32>
    %c0_12 = arith.constant 0 : index
    %c0_13 = arith.constant 0 : index
    %15 = vector.load %arg6[%c0_12, %c0_13] : memref<128x64xf32, #tpu.memory_space<vmem>>, vector<128x64xf32>
    %cst_14 = arith.constant dense<0.000000e+00> : vector<8x64xf32>
    %16 = tpu.matmul %14, %15, %cst_14 {dimension_numbers = #tpu.dot_dimension_numbers<[1], [0], [0], [1], [0, 0, 1, 1], [], []>} : vector<8x128xf32>, vector<128x64xf32>, vector<8x64xf32> -> vector<8x64xf32>
    %c0_15 = arith.constant 0 : index
    %c0_16 = arith.constant 0 : index
    %17 = vector.load %arg7[%c0_15, %c0_16] : memref<1x64xf32, #tpu.memory_space<vmem>>, vector<1x64xf32>
    %18 = vector.broadcast %17 : vector<1x64xf32> to vector<8x64xf32>
    %19 = arith.addf %16, %18 : vector<8x64xf32>
    %c0_17 = arith.constant 0 : index
    %c0_18 = arith.constant 0 : index
    %20 = vector.load %arg8[%c0_17, %c0_18] : memref<8x64xf32, #tpu.memory_space<vmem>>, vector<8x64xf32>
    tpu.vector_store %arg8[%c0_17, %c0_18], %19 {strides = array<i32>} : memref<8x64xf32, #tpu.memory_space<vmem>>, vector<8x64xf32>,
    return
  }
  func.func @transform_0(%arg0: i32) -> (i32, i32) {
    %c0_i32 = arith.constant 0 : i32
    %c0_i32_0 = arith.constant 0 : i32
    return %arg0, %c0_i32 : i32, i32
  }
  func.func @transform_1(%arg0: i32) -> (i32, i32) {
    %c0_i32 = arith.constant 0 : i32
    %c0_i32_0 = arith.constant 0 : i32
    %c0_i32_1 = arith.constant 0 : i32
    return %c0_i32, %c0_i32_0 : i32, i32
  }
  func.func @transform_2(%arg0: i32) -> (i32, i32) {
    %c0_i32 = arith.constant 0 : i32
    %c0_i32_0 = arith.constant 0 : i32
    %c0_i32_1 = arith.constant 0 : i32
    return %c0_i32, %c0_i32_0 : i32, i32
  }
  func.func @transform_3(%arg0: i32) -> (i32, i32) {
    %c0_i32 = arith.constant 0 : i32
    %c0_i32_0 = arith.constant 0 : i32
    %c0_i32_1 = arith.constant 0 : i32
    return %c0_i32, %c0_i32_0 : i32, i32
  }
  func.func @transform_4(%arg0: i32) -> (i32, i32) {
    %c0_i32 = arith.constant 0 : i32
    %c0_i32_0 = arith.constant 0 : i32
    %c0_i32_1 = arith.constant 0 : i32
    return %c0_i32, %c0_i32_0 : i32, i32
  }
  func.func @transform_5(%arg0: i32) -> (i32, i32) {
    %c0_i32 = arith.constant 0 : i32
    %c0_i32_0 = arith.constant 0 : i32
    %c0_i32_1 = arith.constant 0 : i32
    return %c0_i32, %c0_i32_0 : i32, i32
  }
  func.func @transform_6(%arg0: i32) -> (i32, i32) {
    %c0_i32 = arith.constant 0 : i32
    %c0_i32_0 = arith.constant 0 : i32
    %c0_i32_1 = arith.constant 0 : i32
    return %c0_i32, %c0_i32_0 : i32, i32
  }
  func.func @transform_7(%arg0: i32) -> (i32, i32) {
    %c0_i32 = arith.constant 0 : i32
    %c0_i32_0 = arith.constant 0 : i32
    return %arg0, %c0_i32 : i32, i32
  }
}

</mosaic_0001>

<llo_original>
// kernel: tpu_custom_call.1
$region0: #{tpu_custom_call.1}
  #allocation0 [shape = 'u32[]', space=smem, size = 0x4, offset = 0x4, fixed_abs, tag = 'smem constant byte address 0x4 - core index']
  #allocation1 [shape = 'u32[144,128]{1,0:T(1,128)}', space=vmem, size = 0x12000, scoped, tag = 'internal scratch']
  %s0 = inlined_call_operand.hbm [shape: f32[16,64], index: 0, kind: input, shape index: {}]
  %s1 = inlined_call_operand.vmem [shape: f32[64,128], index: 1, kind: input, shape index: {}]
  %s2 = inlined_call_operand.vmem [shape: f32[1,128], index: 2, kind: input, shape index: {}]
  %s3 = inlined_call_operand.vmem [shape: f32[128,128], index: 3, kind: input, shape index: {}]
  %s4 = inlined_call_operand.vmem [shape: f32[1,128], index: 4, kind: input, shape index: {}]
  %s5 = inlined_call_operand.vmem [shape: f32[128,64], index: 5, kind: input, shape index: {}]
  %s6 = inlined_call_operand.vmem [shape: f32[1,64], index: 6, kind: input, shape index: {}]
  %s7 = inlined_call_operand.hbm [shape: f32[16,64], index: 7, kind: output, shape index: {}]
  %s8 = sld [smem:[#allocation0]]
  $region65: #{tpu_custom_call.1} parent=0
    _
  %s10 = ssub.s32 1, %s8
  %s11 = scalar_select 0, %s10, %s8
  $region1: #{tpu_custom_call.1} parent=0
    #allocation2 [shape = 'u8[8192]{0}', space=vmem, size = 0x2000, scoped, tag = 'input window, operand 0']
    #allocation3 [shape = 's32[2]{0}', space=sflag, size = 0x8, scoped, tag = 'scoped memory for tpu_custom_call.1']
    #allocation4 [shape = 's32[2]{0}', space=sflag, size = 0x8, scoped, tag = 'scoped memory for tpu_custom_call.1']
    #allocation5 [shape = 'u8[8192]{0}', space=vmem, size = 0x2000, scoped, tag = 'output window, operand 0']
    %12 = vsyncpa [#allocation3], 0
    %s13 = scalar_lea.sflag [#allocation3], 1
    %14 = vsyncpa %s13, 0
    %15 = vsyncpa [#allocation4], 0
    %s16 = scalar_lea.sflag [#allocation4], 1
    %17 = vsyncpa %s16, 0
    loop: start=0, step=1, limit=4
    $region2: #{tpu_custom_call.1} parent=1 // loop_pre_header
      _
    $region3: #{tpu_custom_call.1} parent=1 // loop_header
      %s19 = sphi 0, %s23
      %p20 = scmp.ge.s32.totalorder %s19, 4
      %s29 = sphi 0, %s31
      %s32 = sphi 0, %s29
      %s33 = sphi 0, %s32
      %s49 = sphi 0, %s33
      %s53 = sphi 0, %s53
      %s55 = sphi 0, %s53
      %s56 = sphi 0, %s55
      %s70 = sphi 0, %s56
      %s74 = sphi 0, %s74
      %s76 = sphi 0, %s74
      %s77 = sphi 0, %s76
      %s91 = sphi 0, %s77
      %s95 = sphi 0, %s95
      %s97 = sphi 0, %s95
      %s98 = sphi 0, %s97
      %s112 = sphi 0, %s98
      %s116 = sphi 0, %s116
      %s118 = sphi 0, %s116
      %s119 = sphi 0, %s118
      %s133 = sphi 0, %s119
      %s137 = sphi 0, %s137
      %s139 = sphi 0, %s137
      %s140 = sphi 0, %s139
      %s154 = sphi 0, %s140
      %s158 = sphi 0, %s158
      %s160 = sphi 0, %s158
      %s161 = sphi 0, %s160
      %s175 = sphi 0, %s161
      %s181 = sphi 0, %s183
      %s184 = sphi 0, %s181
      %s185 = sphi 0, %s184
      %s201 = sphi 0, %s185
    $region4: #{tpu_custom_call.1} parent=1 // loop_header_branch
      %22 = sbr.rel (%p20) target = $region8
    $region5: #{tpu_custom_call.1} parent=1 // loop_body
      %s24 = ssub.s32 %s19, 1
      %s25 = ssub.s32 %s19, 2
      %s26 = sadd.s32 %s19, 1
      %s27 = ssub.s32 %s19, %s26
      %p28 = scmp.eq.s32.totalorder %s27, 0
      %s30 = sadd.s32 %s29, 1
      %s31 = scalar_select %p28, %s29, %s30
      %p34 = pneg %p28
      %p35 = scmp.eq.s32.totalorder %s19, 1
      %p36 = por %p34, %p35
      %p37 = scmp.ne.s32.totalorder %s29, %s32
      %p38 = scmp.eq.s32.totalorder %s19, 0
      %p39 = por %p37, %p38
      %p40 = scmp.ne.s32.totalorder %s29, %s32
      %p41 = scmp.eq.s32.totalorder %s24, 1
      %p42 = por %p40, %p41
      %p43 = scmp.ne.s32.totalorder %s32, %s33
      %p44 = scmp.eq.s32.totalorder %s24, 0
      %p45 = por %p43, %p44
      %p46 = scmp.ne.s32.totalorder %s32, %s33
      %p47 = scmp.eq.s32.totalorder %s25, 1
      %p48 = por %p46, %p47
      %p50 = scmp.ne.s32.totalorder %s33, %s49
      %p51 = scmp.eq.s32.totalorder %s25, 0
      %p52 = por %p50, %p51
      %s54 = sadd.s32 %s53, 1
      %p57 = scmp.eq.s32.totalorder %s19, 1
      %p58 = scmp.ne.s32.totalorder %s53, %s55
      %p59 = scmp.eq.s32.totalorder %s19, 0
      %p60 = por %p58, %p59
      %p61 = scmp.ne.s32.totalorder %s53, %s55
      %p62 = scmp.eq.s32.totalorder %s24, 1
      %p63 = por %p61, %p62
      %p64 = scmp.ne.s32.totalorder %s55, %s56
      %p65 = scmp.eq.s32.totalorder %s24, 0
      %p66 = por %p64, %p65
      %p67 = scmp.ne.s32.totalorder %s55, %s56
      %p68 = scmp.eq.s32.totalorder %s25, 1
      %p69 = por %p67, %p68
      %p71 = scmp.ne.s32.totalorder %s56, %s70
      %p72 = scmp.eq.s32.totalorder %s25, 0
      %p73 = por %p71, %p72
      %s75 = sadd.s32 %s74, 1
      %p78 = scmp.eq.s32.totalorder %s19, 1
      %p79 = scmp.ne.s32.totalorder %s74, %s76
      %p80 = scmp.eq.s32.totalorder %s19, 0
      %p81 = por %p79, %p80
      %p82 = scmp.ne.s32.totalorder %s74, %s76
      %p83 = scmp.eq.s32.totalorder %s24, 1
      %p84 = por %p82, %p83
      %p85 = scmp.ne.s32.totalorder %s76, %s77
      %p86 = scmp.eq.s32.totalorder %s24, 0
      %p87 = por %p85, %p86
      %p88 = scmp.ne.s32.totalorder %s76, %s77
      %p89 = scmp.eq.s32.totalorder %s25, 1
      %p90 = por %p88, %p89
      %p92 = scmp.ne.s32.totalorder %s77, %s91
      %p93 = scmp.eq.s32.totalorder %s25, 0
      %p94 = por %p92, %p93
      %s96 = sadd.s32 %s95, 1
      %p99 = scmp.eq.s32.totalorder %s19, 1
      %p100 = scmp.ne.s32.totalorder %s95, %s97
      %p101 = scmp.eq.s32.totalorder %s19, 0
      %p102 = por %p100, %p101
      %p103 = scmp.ne.s32.totalorder %s95, %s97
      %p104 = scmp.eq.s32.totalorder %s24, 1
      %p105 = por %p103, %p104
      %p106 = scmp.ne.s32.totalorder %s97, %s98
      %p107 = scmp.eq.s32.totalorder %s24, 0
      %p108 = por %p106, %p107
      %p109 = scmp.ne.s32.totalorder %s97, %s98
      %p110 = scmp.eq.s32.totalorder %s25, 1
      %p111 = por %p109, %p110
      %p113 = scmp.ne.s32.totalorder %s98, %s112
      %p114 = scmp.eq.s32.totalorder %s25, 0
      %p115 = por %p113, %p114
      %s117 = sadd.s32 %s116, 1
      %p120 = scmp.eq.s32.totalorder %s19, 1
      %p121 = scmp.ne.s32.totalorder %s116, %s118
      %p122 = scmp.eq.s32.totalorder %s19, 0
      %p123 = por %p121, %p122
      %p124 = scmp.ne.s32.totalorder %s116, %s118
      %p125 = scmp.eq.s32.totalorder %s24, 1
      %p126 = por %p124, %p125
      %p127 = scmp.ne.s32.totalorder %s118, %s119
      %p128 = scmp.eq.s32.totalorder %s24, 0
      %p129 = por %p127, %p128
      %p130 = scmp.ne.s32.totalorder %s118, %s119
      %p131 = scmp.eq.s32.totalorder %s25, 1
      %p132 = por %p130, %p131
      %p134 = scmp.ne.s32.totalorder %s119, %s133
      %p135 = scmp.eq.s32.totalorder %s25, 0
      %p136 = por %p134, %p135
      %s138 = sadd.s32 %s137, 1
      %p141 = scmp.eq.s32.totalorder %s19, 1
      %p142 = scmp.ne.s32.totalorder %s137, %s139
      %p143 = scmp.eq.s32.totalorder %s19, 0
      %p144 = por %p142, %p143
      %p145 = scmp.ne.s32.totalorder %s137, %s139
      %p146 = scmp.eq.s32.totalorder %s24, 1
      %p147 = por %p145, %p146
      %p148 = scmp.ne.s32.totalorder %s139, %s140
      %p149 = scmp.eq.s32.totalorder %s24, 0
      %p150 = por %p148, %p149
      %p151 = scmp.ne.s32.totalorder %s139, %s140
      %p152 = scmp.eq.s32.totalorder %s25, 1
      %p153 = por %p151, %p152
      %p155 = scmp.ne.s32.totalorder %s140, %s154
      %p156 = scmp.eq.s32.totalorder %s25, 0
      %p157 = por %p155, %p156
      %s159 = sadd.s32 %s158, 1
      %p162 = scmp.eq.s32.totalorder %s19, 1
      %p163 = scmp.ne.s32.totalorder %s158, %s160
      %p164 = scmp.eq.s32.totalorder %s19, 0
      %p165 = por %p163, %p164
      %p166 = scmp.ne.s32.totalorder %s158, %s160
      %p167 = scmp.eq.s32.totalorder %s24, 1
      %p168 = por %p166, %p167
      %p169 = scmp.ne.s32.totalorder %s160, %s161
      %p170 = scmp.eq.s32.totalorder %s24, 0
      %p171 = por %p169, %p170
      %p172 = scmp.ne.s32.totalorder %s160, %s161
      %p173 = scmp.eq.s32.totalorder %s25, 1
      %p174 = por %p172, %p173
      %p176 = scmp.ne.s32.totalorder %s161, %s175
      %p177 = scmp.eq.s32.totalorder %s25, 0
      %p178 = por %p176, %p177
      %s179 = ssub.s32 %s19, %s26
      %p180 = scmp.eq.s32.totalorder %s179, 0
      %s182 = sadd.s32 %s181, 1
      %s183 = scalar_select %p180, %s181, %s182
      %p186 = pneg %p180
      %p187 = scmp.eq.s32.totalorder %s19, 1
      %p188 = por %p186, %p187
      %p189 = scmp.ne.s32.totalorder %s181, %s184
      %p190 = scmp.eq.s32.totalorder %s19, 0
      %p191 = por %p189, %p190
      %p192 = scmp.ne.s32.totalorder %s181, %s184
      %p193 = scmp.eq.s32.totalorder %s24, 1
      %p194 = por %p192, %p193
      %p195 = scmp.ne.s32.totalorder %s184, %s185
      %p196 = scmp.eq.s32.totalorder %s24, 0
      %p197 = por %p195, %p196
      %p198 = scmp.ne.s32.totalorder %s184, %s185
      %p199 = scmp.eq.s32.totalorder %s25, 1
      %p200 = por %p198, %p199
      %p202 = scmp.ne.s32.totalorder %s185, %s201
      %p203 = scmp.eq.s32.totalorder %s25, 0
      %p204 = por %p202, %p203
      %p205 = scmp.le.s32.totalorder 1, %s19
      %p206 = scmp.lt.s32.totalorder %s19, 3
      %p207 = pnand %p205, %p206
      %p208 = pneg %p207
      // Predicated region
      $region9: #{tpu_custom_call.1} parent=5 // pred_check
        _
      $region10: #{tpu_custom_call.1} parent=5 // pred_check_branch
        %210 = sbr.rel (%p207) target = $region12
      $region11: #{tpu_custom_call.1} parent=5 // pred_region
        %s211 = ssub.s32 %s19, 1
        // Predicated region
        $region13: #{tpu_custom_call.1} parent=11 // pred_check
          %p212 = pneg %p66
        $region14: #{tpu_custom_call.1} parent=11 // pred_check_branch
          %214 = sbr.rel (%p212) target = $region16
        $region15: #{tpu_custom_call.1} parent=11 // pred_region
          _
        $region16: #{tpu_custom_call.1} parent=11 // pred_fallthru
          _
        // Predicated region
        $region17: #{tpu_custom_call.1} parent=11 // pred_check
          %p215 = pneg %p87
        $region18: #{tpu_custom_call.1} parent=11 // pred_check_branch
          %217 = sbr.rel (%p215) target = $region20
        $region19: #{tpu_custom_call.1} parent=11 // pred_region
          _
        $region20: #{tpu_custom_call.1} parent=11 // pred_fallthru
          _
        // Predicated region
        $region21: #{tpu_custom_call.1} parent=11 // pred_check
          %p218 = pneg %p108
        $region22: #{tpu_custom_call.1} parent=11 // pred_check_branch
          %220 = sbr.rel (%p218) target = $region24
        $region23: #{tpu_custom_call.1} parent=11 // pred_region
          _
        $region24: #{tpu_custom_call.1} parent=11 // pred_fallthru
          _
        // Predicated region
        $region25: #{tpu_custom_call.1} parent=11 // pred_check
          %p221 = pneg %p129
        $region26: #{tpu_custom_call.1} parent=11 // pred_check_branch
          %223 = sbr.rel (%p221) target = $region28
        $region27: #{tpu_custom_call.1} parent=11 // pred_region
          _
        $region28: #{tpu_custom_call.1} parent=11 // pred_fallthru
          _
        // Predicated region
        $region29: #{tpu_custom_call.1} parent=11 // pred_check
          %p224 = pneg %p150
        $region30: #{tpu_custom_call.1} parent=11 // pred_check_branch
          %226 = sbr.rel (%p224) target = $region32
        $region31: #{tpu_custom_call.1} parent=11 // pred_region
          _
        $region32: #{tpu_custom_call.1} parent=11 // pred_fallthru
          _
        // Predicated region
        $region33: #{tpu_custom_call.1} parent=11 // pred_check
          %p227 = pneg %p171
        $region34: #{tpu_custom_call.1} parent=11 // pred_check_branch
          %229 = sbr.rel (%p227) target = $region36
        $region35: #{tpu_custom_call.1} parent=11 // pred_region
          _
        $region36: #{tpu_custom_call.1} parent=11 // pred_fallthru
          _
      $region12: #{tpu_custom_call.1} parent=5 // pred_fallthru
        _
      %p230 = scmp.lt.s32.totalorder %s19, 2
      // Predicated region
      $region37: #{tpu_custom_call.1} parent=5 // pred_check
        %p231 = pneg %p230
      $region38: #{tpu_custom_call.1} parent=5 // pred_check_branch
        %233 = sbr.rel (%p231) target = $region40
      $region39: #{tpu_custom_call.1} parent=5 // pred_region
        // Predicated region
        $region41: #{tpu_custom_call.1} parent=39 // pred_check
          %p234 = pneg %p39
        $region42: #{tpu_custom_call.1} parent=39 // pred_check_branch
          %236 = sbr.rel (%p234) target = $region44
        $region43: #{tpu_custom_call.1} parent=39 // pred_region
          %s237 = sand.u32 %s29, 1
          %s238 = scalar_lea.sflag [#allocation3], %s237
          %s239 = sand.u32 %s29, 1
          %s240 = smul.addr %s239, 8
          %s241 = scalar_lea.vmem [#allocation2], %s240
          %s243 = ssub.s32 128, 128
          %244 = vsyncadd %s238, %s243
          %s245 = smul.addr %s19, 128
          %s246 = scalar_lea.hbm %s0, %s245
          %s248 = sshll.u32 %s241, 4
          %s249 = int_to_ptr.vmem [resolvable:$true] %s248
          %251 = dma.hbm_to_vmem [thread:$0]  %s246, 128, %s249, %s238
        $region44: #{tpu_custom_call.1} parent=39 // pred_fallthru
          _
      $region40: #{tpu_custom_call.1} parent=5 // pred_fallthru
        _
      %p252 = scmp.le.s32.totalorder 1, %s19
      %p253 = scmp.lt.s32.totalorder %s19, 3
      %p254 = pnand %p252, %p253
      %p255 = pneg %p254
      // Predicated region
      $region45: #{tpu_custom_call.1} parent=5 // pred_check
        _
      $region46: #{tpu_custom_call.1} parent=5 // pred_check_branch
        %257 = sbr.rel (%p254) target = $region48
      $region47: #{tpu_custom_call.1} parent=5 // pred_region
        %s258 = ssub.s32 %s19, 1
        %s259 = sand.u32 %s32, 1
        %s260 = scalar_lea.sflag [#allocation3], %s259
        %s261 = sand.u32 %s32, 1
        %s262 = smul.addr %s261, 8
        %s263 = scalar_lea.vmem [#allocation2], %s262
        // Predicated region
        $region49: #{tpu_custom_call.1} parent=47 // pred_check
          %p264 = pneg %p45
        $region50: #{tpu_custom_call.1} parent=47 // pred_check_branch
          %266 = sbr.rel (%p264) target = $region52
        $region51: #{tpu_custom_call.1} parent=47 // pred_region
          %267 = dma.done %s260, 128
        $region52: #{tpu_custom_call.1} parent=47 // pred_fallthru
          _
        %s268 = sand.u32 %s32, 1
        %s269 = scalar_lea.sflag [#allocation3], %s268
        %s270 = sand.u32 %s32, 1
        %s271 = smul.addr %s270, 8
        %s272 = scalar_lea.vmem [#allocation2], %s271
        %p273 = pneg %p45
        %p274 = pneg %p42
        %p275 = pneg %p66
        %p276 = pneg %p63
        %p277 = pneg %p87
        %p278 = pneg %p84
        %p279 = pneg %p108
        %p280 = pneg %p105
        %p281 = pneg %p129
        %p282 = pneg %p126
        %p283 = pneg %p150
        %p284 = pneg %p147
        %p285 = pneg %p171
        %p286 = pneg %p168
        %p287 = pneg %p197
        %p288 = pneg %p194
        %s289 = sand.u32 %s184, 1
        %s290 = scalar_lea.sflag [#allocation4], %s289
        %s291 = sand.u32 %s184, 1
        %s292 = smul.addr %s291, 8
        %s293 = scalar_lea.vmem [#allocation5], %s292
        %v294 = vld [vmem:[%s263] sm:$0xff]
        %v295 = vld [vmem:[%s1] sm:$0xff]
        %v296 = vld [vmem:[%s1 + $0x8] sm:$0xff]
        %v297 = vld [vmem:[%s1 + $0x10] sm:$0xff]
        %v298 = vld [vmem:[%s1 + $0x18] sm:$0xff]
        %v299 = vld [vmem:[%s1 + $0x20] sm:$0xff]
        %v300 = vld [vmem:[%s1 + $0x28] sm:$0xff]
        %v301 = vld [vmem:[%s1 + $0x30] sm:$0xff]
        %v302 = vld [vmem:[%s1 + $0x38] sm:$0xff]
        %v303 = vld [vmem:[%s2] sm:$0x1]
        %v305 = vlaneseq
        %v306 = vshrl.u32 %v305, 7
        %v307 = vsub.s32 0, %v306
        %v308 = vrot.slane %v303, %v307
        %vm310 = vcmask 523264
        %v312 = vsel %vm310, %v294, 0
        %314 = vmatprep.subr.mxu0 0.0
        %315 = vmatpush1.msra.mxu0 %v295
        %316 = vmatprep.subr.mxu0 0.0
        %317 = vmatpush1.msra.mxu0 %v296
        %318 = vmatprep.subr.mxu0 0.0
        %319 = vmatpush1.msra.mxu0 %v297
        %320 = vmatprep.subr.mxu0 0.0
        %321 = vmatpush1.msra.mxu0 %v298
        %322 = vmatprep.subr.mxu0 0.0
        %323 = vmatpush1.msra.mxu0 %v299
        %324 = vmatprep.subr.mxu0 0.0
        %325 = vmatpush1.msra.mxu0 %v300
        %326 = vmatprep.subr.mxu0 0.0
        %327 = vmatpush1.msra.mxu0 %v301
        %328 = vmatprep.subr.mxu0 0.0
        %329 = vmatpush1.msra.mxu0 %v302
        %330 = vmatprep.subr.mxu0 0.0
        %331 = vmatpush1.msra.mxu0 0.0
        %332 = vmatprep.subr.mxu0 0.0
        %333 = vmatpush1.msra.mxu0 0.0
        %334 = vmatprep.subr.mxu0 0.0
        %335 = vmatpush1.msra.mxu0 0.0
        %336 = vmatprep.subr.mxu0 0.0
        %337 = vmatpush1.msra.mxu0 0.0
        %338 = vmatprep.subr.mxu0 0.0
        %339 = vmatpush1.msra.mxu0 0.0
        %340 = vmatprep.subr.mxu0 0.0
        %341 = vmatpush1.msra.mxu0 0.0
        %342 = vmatprep.subr.mxu0 0.0
        %343 = vmatpush1.msra.mxu0 0.0
        %344 = vmatprep.subr.mxu0 0.0
        %345 = vmatpush1.msra.mxu0 0.0
        %346 = vmatprep.subr.mxu0 0.0
        %347 = vmatpush1.msra.mxu0 0.0
        %348 = vmatprep.subr.mxu0 0.0
        %349 = vmatpush1.msra.mxu0 0.0
        %350 = vmatprep.subr.mxu0 0.0
        %351 = vmatpush1.msra.mxu0 0.0
        %352 = vmatprep.subr.mxu0 0.0
        %353 = vmatpush1.msra.mxu0 0.0
        %354 = vmatprep.subr.mxu0 0.0
        %355 = vmatpush1.msra.mxu0 0.0
        %356 = vmatprep.subr.mxu0 0.0
        %357 = vmatpush1.msra.mxu0 0.0
        %358 = vmatprep.subr.mxu0 0.0
        %359 = vmatpush1.msra.mxu0 0.0
        %360 = vmatprep.subr.mxu0 0.0
        %361 = vmatpush1.msra.mxu0 0.0
        %362 = vmatprep.subr.mxu0 0.0
        %363 = vmatpush1.msra.mxu0 0.0
        %364 = vmatprep.subr.mxu0 0.0
        %365 = vmatpush1.msra.mxu0 0.0
        %366 = vmatprep.subr.mxu0 0.0
        %367 = vmatpush1.msra.mxu0 0.0
        %368 = vmatprep.subr.mxu0 0.0
        %369 = vmatpush1.msra.mxu0 0.0
        %370 = vmatprep.subr.mxu0 0.0
        %371 = vmatpush1.msra.mxu0 0.0
        %372 = vmatprep.subr.mxu0 0.0
        %373 = vmatpush1.msra.mxu0 0.0
        %374 = vmatprep.subr.mxu0 0.0
        %375 = vmatpush1.msra.mxu0 0.0
        %376 = vmatprep.subr.mxu0 0.0
        %377 = vmatpush1.msra.mxu0 0.0
        %378 = vmatprep.mubr.f32.mxu0 0.0
        %379 = vmatmul.mubr.f32.gmra.mrb[0].mxu0 %v312
        %v380 = vpop.f32.mrb[0].mxu0
        %v381 = vadd.f32 %v308, %v380
        %v382 = vpop.f32.mrb[0].mxu0
        %383 = vdwg.mxu0
        %v384 = vmax.f32 %v381, 0.0
        %v385 = vld [vmem:[%s3] sm:$0xff]
        %v386 = vld [vmem:[%s3 + $0x8] sm:$0xff]
        %v387 = vld [vmem:[%s3 + $0x10] sm:$0xff]
        %v388 = vld [vmem:[%s3 + $0x18] sm:$0xff]
        %v389 = vld [vmem:[%s3 + $0x20] sm:$0xff]
        %v390 = vld [vmem:[%s3 + $0x28] sm:$0xff]
        %v391 = vld [vmem:[%s3 + $0x30] sm:$0xff]
        %v392 = vld [vmem:[%s3 + $0x38] sm:$0xff]
        %v393 = vld [vmem:[%s3 + $0x40] sm:$0xff]
        %v394 = vld [vmem:[%s3 + $0x48] sm:$0xff]
        %v395 = vld [vmem:[%s3 + $0x50] sm:$0xff]
        %v396 = vld [vmem:[%s3 + $0x58] sm:$0xff]
        %v397 = vld [vmem:[%s3 + $0x60] sm:$0xff]
        %v398 = vld [vmem:[%s3 + $0x68] sm:$0xff]
        %v399 = vld [vmem:[%s3 + $0x70] sm:$0xff]
        %v400 = vld [vmem:[%s3 + $0x78] sm:$0xff]
        %v401 = vld [vmem:[%s4] sm:$0x1]
        %v403 = vlaneseq
        %v404 = vshrl.u32 %v403, 7
        %v405 = vsub.s32 0, %v404
        %v406 = vrot.slane %v401, %v405
        %408 = vmatprep.subr.mxu0 0.0
        %409 = vmatpush1.msra.mxu0 %v385
        %410 = vmatprep.subr.mxu0 0.0
        %411 = vmatpush1.msra.mxu0 %v386
        %412 = vmatprep.subr.mxu0 0.0
        %413 = vmatpush1.msra.mxu0 %v387
        %414 = vmatprep.subr.mxu0 0.0
        %415 = vmatpush1.msra.mxu0 %v388
        %416 = vmatprep.subr.mxu0 0.0
        %417 = vmatpush1.msra.mxu0 %v389
        %418 = vmatprep.subr.mxu0 0.0
        %419 = vmatpush1.msra.mxu0 %v390
        %420 = vmatprep.subr.mxu0 0.0
        %421 = vmatpush1.msra.mxu0 %v391
        %422 = vmatprep.subr.mxu0 0.0
        %423 = vmatpush1.msra.mxu0 %v392
        %424 = vmatprep.subr.mxu0 0.0
        %425 = vmatpush1.msra.mxu0 %v393
        %426 = vmatprep.subr.mxu0 0.0
        %427 = vmatpush1.msra.mxu0 %v394
        %428 = vmatprep.subr.mxu0 0.0
        %429 = vmatpush1.msra.mxu0 %v395
        %430 = vmatprep.subr.mxu0 0.0
        %431 = vmatpush1.msra.mxu0 %v396
        %432 = vmatprep.subr.mxu0 0.0
        %433 = vmatpush1.msra.mxu0 %v397
        %434 = vmatprep.subr.mxu0 0.0
        %435 = vmatpush1.msra.mxu0 %v398
        %436 = vmatprep.subr.mxu0 0.0
        %437 = vmatpush1.msra.mxu0 %v399
        %438 = vmatprep.subr.mxu0 0.0
        %439 = vmatpush1.msra.mxu0 %v400
        %440 = vmatprep.subr.mxu0 0.0
        %441 = vmatpush1.msra.mxu0 0.0
        %442 = vmatprep.subr.mxu0 0.0
        %443 = vmatpush1.msra.mxu0 0.0
        %444 = vmatprep.subr.mxu0 0.0
        %445 = vmatpush1.msra.mxu0 0.0
        %446 = vmatprep.subr.mxu0 0.0
        %447 = vmatpush1.msra.mxu0 0.0
        %448 = vmatprep.subr.mxu0 0.0
        %449 = vmatpush1.msra.mxu0 0.0
        %450 = vmatprep.subr.mxu0 0.0
        %451 = vmatpush1.msra.mxu0 0.0
        %452 = vmatprep.subr.mxu0 0.0
        %453 = vmatpush1.msra.mxu0 0.0
        %454 = vmatprep.subr.mxu0 0.0
        %455 = vmatpush1.msra.mxu0 0.0
        %456 = vmatprep.subr.mxu0 0.0
        %457 = vmatpush1.msra.mxu0 0.0
        %458 = vmatprep.subr.mxu0 0.0
        %459 = vmatpush1.msra.mxu0 0.0
        %460 = vmatprep.subr.mxu0 0.0
        %461 = vmatpush1.msra.mxu0 0.0
        %462 = vmatprep.subr.mxu0 0.0
        %463 = vmatpush1.msra.mxu0 0.0
        %464 = vmatprep.subr.mxu0 0.0
        %465 = vmatpush1.msra.mxu0 0.0
        %466 = vmatprep.subr.mxu0 0.0
        %467 = vmatpush1.msra.mxu0 0.0
        %468 = vmatprep.subr.mxu0 0.0
        %469 = vmatpush1.msra.mxu0 0.0
        %470 = vmatprep.subr.mxu0 0.0
        %471 = vmatpush1.msra.mxu0 0.0
        %472 = vmatprep.mubr.f32.mxu0 0.0
        %473 = vmatmul.mubr.f32.gmra.mrb[0].mxu0 %v384
        %v474 = vpop.f32.mrb[0].mxu0
        %v475 = vadd.f32 %v406, %v474
        %v476 = vpop.f32.mrb[0].mxu0
        %477 = vdwg.mxu0
        %v478 = vmax.f32 %v475, 0.0
        %v479 = vld [vmem:[%s5] sm:$0xff]
        %v480 = vld [vmem:[%s5 + $0x8] sm:$0xff]
        %v481 = vld [vmem:[%s5 + $0x10] sm:$0xff]
        %v482 = vld [vmem:[%s5 + $0x18] sm:$0xff]
        %v483 = vld [vmem:[%s5 + $0x20] sm:$0xff]
        %v484 = vld [vmem:[%s5 + $0x28] sm:$0xff]
        %v485 = vld [vmem:[%s5 + $0x30] sm:$0xff]
        %v486 = vld [vmem:[%s5 + $0x38] sm:$0xff]
        %v487 = vld [vmem:[%s5 + $0x40] sm:$0xff]
        %v488 = vld [vmem:[%s5 + $0x48] sm:$0xff]
        %v489 = vld [vmem:[%s5 + $0x50] sm:$0xff]
        %v490 = vld [vmem:[%s5 + $0x58] sm:$0xff]
        %v491 = vld [vmem:[%s5 + $0x60] sm:$0xff]
        %v492 = vld [vmem:[%s5 + $0x68] sm:$0xff]
        %v493 = vld [vmem:[%s5 + $0x70] sm:$0xff]
        %v494 = vld [vmem:[%s5 + $0x78] sm:$0xff]
        %v495 = vld [vmem:[%s6] sm:$0x1]
        %v497 = vlaneseq
        %v498 = vshrl.u32 %v497, 7
        %v499 = vsub.s32 0, %v498
        %v500 = vrot.slane %v495, %v499
        %502 = vmatprep.subr.mxu0 0.0
        %503 = vmatpush1.msra.mxu0 %v479
        %504 = vmatprep.subr.mxu0 0.0
        %505 = vmatpush1.msra.mxu0 %v480
        %506 = vmatprep.subr.mxu0 0.0
        %507 = vmatpush1.msra.mxu0 %v481
        %508 = vmatprep.subr.mxu0 0.0
        %509 = vmatpush1.msra.mxu0 %v482
        %510 = vmatprep.subr.mxu0 0.0
        %511 = vmatpush1.msra.mxu0 %v483
        %512 = vmatprep.subr.mxu0 0.0
        %513 = vmatpush1.msra.mxu0 %v484
        %514 = vmatprep.subr.mxu0 0.0
        %515 = vmatpush1.msra.mxu0 %v485
        %516 = vmatprep.subr.mxu0 0.0
        %517 = vmatpush1.msra.mxu0 %v486
        %518 = vmatprep.subr.mxu0 0.0
        %519 = vmatpush1.msra.mxu0 %v487
        %520 = vmatprep.subr.mxu0 0.0
        %521 = vmatpush1.msra.mxu0 %v488
        %522 = vmatprep.subr.mxu0 0.0
        %523 = vmatpush1.msra.mxu0 %v489
        %524 = vmatprep.subr.mxu0 0.0
        %525 = vmatpush1.msra.mxu0 %v490
        %526 = vmatprep.subr.mxu0 0.0
        %527 = vmatpush1.msra.mxu0 %v491
        %528 = vmatprep.subr.mxu0 0.0
        %529 = vmatpush1.msra.mxu0 %v492
        %530 = vmatprep.subr.mxu0 0.0
        %531 = vmatpush1.msra.mxu0 %v493
        %532 = vmatprep.subr.mxu0 0.0
        %533 = vmatpush1.msra.mxu0 %v494
        %534 = vmatprep.subr.mxu0 0.0
        %535 = vmatpush1.msra.mxu0 0.0
        %536 = vmatprep.subr.mxu0 0.0
        %537 = vmatpush1.msra.mxu0 0.0
        %538 = vmatprep.subr.mxu0 0.0
        %539 = vmatpush1.msra.mxu0 0.0
        %540 = vmatprep.subr.mxu0 0.0
        %541 = vmatpush1.msra.mxu0 0.0
        %542 = vmatprep.subr.mxu0 0.0
        %543 = vmatpush1.msra.mxu0 0.0
        %544 = vmatprep.subr.mxu0 0.0
        %545 = vmatpush1.msra.mxu0 0.0
        %546 = vmatprep.subr.mxu0 0.0
        %547 = vmatpush1.msra.mxu0 0.0
        %548 = vmatprep.subr.mxu0 0.0
        %549 = vmatpush1.msra.mxu0 0.0
        %550 = vmatprep.subr.mxu0 0.0
        %551 = vmatpush1.msra.mxu0 0.0
        %552 = vmatprep.subr.mxu0 0.0
        %553 = vmatpush1.msra.mxu0 0.0
        %554 = vmatprep.subr.mxu0 0.0
        %555 = vmatpush1.msra.mxu0 0.0
        %556 = vmatprep.subr.mxu0 0.0
        %557 = vmatpush1.msra.mxu0 0.0
        %558 = vmatprep.subr.mxu0 0.0
        %559 = vmatpush1.msra.mxu0 0.0
        %560 = vmatprep.subr.mxu0 0.0
        %561 = vmatpush1.msra.mxu0 0.0
        %562 = vmatprep.subr.mxu0 0.0
        %563 = vmatpush1.msra.mxu0 0.0
        %564 = vmatprep.subr.mxu0 0.0
        %565 = vmatpush1.msra.mxu0 0.0
        %566 = vmatprep.mubr.f32.mxu0 0.0
        %567 = vmatmul.mubr.f32.gmra.mrb[0].mxu0 %v478
        %v568 = vpop.f32.mrb[0].mxu0
        %v569 = vadd.f32 %v500, %v568
        %v570 = vpop.f32.mrb[0].mxu0
        %571 = vdwg.mxu0
        %572 = vst.msk [vmem:[%s293] sm:$0xff] %vm310, %v569
        %s573 = sand.u32 %s184, 1
        %s574 = scalar_lea.sflag [#allocation4], %s573
        %s575 = sand.u32 %s184, 1
        %s576 = smul.addr %s575, 8
        %s577 = scalar_lea.vmem [#allocation5], %s576
        // Predicated region
        $region53: #{tpu_custom_call.1} parent=47 // pred_check
          %p578 = pneg %p194
        $region54: #{tpu_custom_call.1} parent=47 // pred_check_branch
          %580 = sbr.rel (%p578) target = $region56
        $region55: #{tpu_custom_call.1} parent=47 // pred_region
          %s582 = ssub.s32 128, 128
          %583 = vsyncadd %s574, %s582
          %s584 = smul.addr %s24, 128
          %s585 = scalar_lea.hbm %s7, %s584
          %s587 = sshll.u32 %s577, 4
          %s588 = int_to_ptr.vmem [resolvable:$true] %s587
          %590 = dma.vmem_to_hbm [thread:$0]  %s588, 128, %s585, %s574
        $region56: #{tpu_custom_call.1} parent=47 // pred_fallthru
          _
      $region48: #{tpu_custom_call.1} parent=5 // pred_fallthru
        _
      %p591 = scmp.le.s32.totalorder 2, %s19
      // Predicated region
      $region57: #{tpu_custom_call.1} parent=5 // pred_check
        %p592 = pneg %p591
      $region58: #{tpu_custom_call.1} parent=5 // pred_check_branch
        %594 = sbr.rel (%p592) target = $region60
      $region59: #{tpu_custom_call.1} parent=5 // pred_region
        %s595 = ssub.s32 %s19, 2
        // Predicated region
        $region61: #{tpu_custom_call.1} parent=59 // pred_check
          %p596 = pneg %p200
        $region62: #{tpu_custom_call.1} parent=59 // pred_check_branch
          %598 = sbr.rel (%p596) target = $region64
        $region63: #{tpu_custom_call.1} parent=59 // pred_region
          %s599 = sand.u32 %s185, 1
          %s600 = scalar_lea.sflag [#allocation4], %s599
          %s601 = sand.u32 %s185, 1
          %s602 = smul.addr %s601, 8
          %s603 = scalar_lea.vmem [#allocation5], %s602
          %604 = dma.done %s600, 128
        $region64: #{tpu_custom_call.1} parent=59 // pred_fallthru
          _
      $region60: #{tpu_custom_call.1} parent=5 // pred_fallthru
        _
    $region6: #{tpu_custom_call.1} parent=1 // loop_footer
      %s23 = sadd.s32 1, %s19
    $region7: #{tpu_custom_call.1} parent=1 // loop_footer_branch
      %18 = sbr.rel target = $region3
    $region8: #{tpu_custom_call.1} parent=1 // loop_exit
      _
    %605 = vsyncpa [#allocation3], 1
    %s606 = scalar_lea.sflag [#allocation3], 1
    %607 = vsyncpa %s606, 1
    %608 = vsyncpa [#allocation4], 1
    %s609 = scalar_lea.sflag [#allocation4], 1
    %610 = vsyncpa %s609, 1

</llo_original>
